<compile_context>
chip_gen: v5e
topology: v5e:2x2
jax: 0.10.0
libtpu: 0.0.40
codegen_flags: <defaults>
</compile_context>

<pallas_src>
import jax
import jax.numpy as jnp
import numpy as np
from jax.experimental import pallas as pl
from jax.experimental.pallas import tpu as pltpu

SNOW_P = 0.9
# integer-domain threshold: u32 bits < SNOW_P * 2^32  <=>  uniform < SNOW_P
_SNOW_THRESH = np.uint32(int(SNOW_P * (1 << 32)))

LANE = 1024      # lane-dense last dim (multiple of 128)
TR_MAX = 512     # rows per tile -> 512*1024*4B = 2 MiB per buffer


def _snow_kernel(seed_ref, x_ref, o_ref):
    tr, lane = x_ref.shape

    # Global element index of every element in this tile (counter for the hash).
    row = jax.lax.broadcasted_iota(jnp.int32, (tr, lane), 0)
    col = jax.lax.broadcasted_iota(jnp.int32, (tr, lane), 1)
    gidx = (pl.program_id(0) * tr + row) * lane + col      # int32 (wrap is fine)

    # Counter-based PRNG: seed-mix + murmur3-style 32-bit finalizer.
    seed_u = seed_ref[0].astype(jnp.uint32)
    h = gidx.astype(jnp.uint32) ^ (seed_u * np.uint32(0x9E3779B1))
    h = h * np.uint32(0xCC9E2D51)
    h = h ^ (h >> 15)
    h = h * np.uint32(0x85EBCA6B)
    h = h ^ (h >> 13)
    h = h * np.uint32(0xC2B2AE35)
    h = h ^ (h >> 16)

    x = x_ref[...]
    mask = h < _SNOW_THRESH                                 # ~90% True
    o_ref[...] = jnp.where(mask, jnp.zeros_like(x), x)


def snow_model(x, seed=0):
    """Apply the SnowModel forward pass. x: any-shape float array (e.g. NCHW)."""
    orig_shape = x.shape
    total = x.size
    itemsize = jnp.dtype(x.dtype).itemsize

    # Flatten and pad to a lane-dense (rows, LANE) slab.
    flat = x.reshape(-1)
    padded = pl.cdiv(total, LANE) * LANE
    if padded != total:
        flat = jnp.pad(flat, (0, padded - total))
    rows = padded // LANE
    x2d = flat.reshape(rows, LANE)

    # Tile rows; small inputs use the full extent (allowed by the (8,128) rule).
    tr = rows if rows <= TR_MAX else TR_MAX
    grid = (pl.cdiv(rows, tr),)

    seed_arr = jnp.asarray([seed], dtype=jnp.int32)

    out2d = pl.pallas_call(
        _snow_kernel,
        out_shape=jax.ShapeDtypeStruct(x2d.shape, x2d.dtype),
        grid=grid,
        in_specs=[
            pl.BlockSpec(memory_space=pltpu.SMEM),          # seed scalar
            pl.BlockSpec((tr, LANE), lambda i: (i, 0)),     # input tile
        ],
        out_specs=pl.BlockSpec((tr, LANE), lambda i: (i, 0)),
        compiler_params=pltpu.CompilerParams(
            dimension_semantics=("parallel",)),
        cost_estimate=pl.CostEstimate(
            flops=0, transcendentals=0,
            bytes_accessed=2 * padded * itemsize),
    )(seed_arr, x2d)

    return out2d.reshape(-1)[:total].reshape(orig_shape)


if __name__ == "__main__":
    key = jax.random.PRNGKey(0)
    x = jax.random.normal(key, (2, 4, 16, 16), dtype=jnp.float32)

    y = snow_model(x, seed=0)
    y = jax.block_until_ready(y)

    # Sanity checks: surviving elements equal the input; ~90% are zeroed.
    assert y.shape == x.shape and y.dtype == x.dtype
    surviving = y != 0.0
    assert bool(jnp.all(jnp.where(surviving, y == x, True)))
    frac_zero = float(jnp.mean((y == 0.0).astype(jnp.float32)))
    assert 0.80 < frac_zero < 0.98, f"unexpected snow fraction {frac_zero}"

    print("KERNEL_OK")
</pallas_src>

<mosaic_0001>
module attributes {stable_mosaic.version = 11 : i64} {
  func.func @_snow_kernel(%arg0: i32, %arg1: memref<1xi32, #tpu.memory_space<smem>>, %arg2: memref<2x1024xf32, #tpu.memory_space<vmem>>, %arg3: memref<2x1024xf32, #tpu.memory_space<vmem>>) attributes {dimension_semantics = [#tpu.dimension_semantics<parallel>], iteration_bounds = array<i64: 1>, scalar_prefetch = 0 : i64, scratch_operands = 0 : i64, tpu.core_type = #tpu.core_type<tc>, window_params = [{transform_indices = @transform_0, window_bounds = array<i64: 1>}, {transform_indices = @transform_1, window_bounds = array<i64: 2, 1024>}, {transform_indices = @transform_2, window_bounds = array<i64: 2, 1024>}]} {
    %0 = tpu.iota {dimensions = array<i32: 0>} : vector<2x1024xi32>
    %1 = tpu.iota {dimensions = array<i32: 1>} : vector<2x1024xi32>
    %c2_i32 = arith.constant 2 : i32
    %2 = arith.muli %arg0, %c2_i32 : i32
    %3 = vector.broadcast %2 : i32 to vector<2x1024xi32>
    %4 = arith.addi %3, %0 : vector<2x1024xi32>
    %c1024_i32 = arith.constant 1024 : i32
    %5 = vector.broadcast %c1024_i32 : i32 to vector<2x1024xi32>
    %6 = arith.muli %4, %5 : vector<2x1024xi32>
    %7 = arith.addi %6, %1 : vector<2x1024xi32>
    %c0 = arith.constant 0 : index
    %8 = memref.load %arg1[%c0] : memref<1xi32, #tpu.memory_space<smem>>
    %c-1640531535_i32 = arith.constant -1640531535 : i32
    %9 = arith.muli %8, %c-1640531535_i32 : i32
    %10 = vector.broadcast %9 : i32 to vector<2x1024xi32>
    %11 = arith.xori %7, %10 : vector<2x1024xi32>
    %c-862048943_i32 = arith.constant -862048943 : i32
    %12 = vector.broadcast %c-862048943_i32 : i32 to vector<2x1024xi32>
    %13 = arith.muli %11, %12 : vector<2x1024xi32>
    %c15_i32 = arith.constant 15 : i32
    %14 = vector.broadcast %c15_i32 : i32 to vector<2x1024xi32>
    %15 = arith.shrui %13, %14 : vector<2x1024xi32>
    %16 = arith.xori %13, %15 : vector<2x1024xi32>
    %c-2048144789_i32 = arith.constant -2048144789 : i32
    %17 = vector.broadcast %c-2048144789_i32 : i32 to vector<2x1024xi32>
    %18 = arith.muli %16, %17 : vector<2x1024xi32>
    %c13_i32 = arith.constant 13 : i32
    %19 = vector.broadcast %c13_i32 : i32 to vector<2x1024xi32>
    %20 = arith.shrui %18, %19 : vector<2x1024xi32>
    %21 = arith.xori %18, %20 : vector<2x1024xi32>
    %c-1028477387_i32 = arith.constant -1028477387 : i32
    %22 = vector.broadcast %c-1028477387_i32 : i32 to vector<2x1024xi32>
    %23 = arith.muli %21, %22 : vector<2x1024xi32>
    %c16_i32 = arith.constant 16 : i32
    %24 = vector.broadcast %c16_i32 : i32 to vector<2x1024xi32>
    %25 = arith.shrui %23, %24 : vector<2x1024xi32>
    %26 = arith.xori %23, %25 : vector<2x1024xi32>
    %c0_0 = arith.constant 0 : index
    %c0_1 = arith.constant 0 : index
    %27 = vector.load %arg2[%c0_0, %c0_1] : memref<2x1024xf32, #tpu.memory_space<vmem>>, vector<2x1024xf32>
    %c-429496730_i32 = arith.constant -429496730 : i32
    %28 = vector.broadcast %c-429496730_i32 : i32 to vector<2x1024xi32>
    %29 = arith.cmpi ult, %26, %28 : vector<2x1024xi32>
    %cst = arith.constant 0.000000e+00 : f32
    %30 = vector.broadcast %cst : f32 to vector<2x1024xf32>
    %31 = arith.select %29, %30, %27 : vector<2x1024xi1>, vector<2x1024xf32>
    %c0_2 = arith.constant 0 : index
    %c0_3 = arith.constant 0 : index
    %32 = vector.load %arg3[%c0_2, %c0_3] : memref<2x1024xf32, #tpu.memory_space<vmem>>, vector<2x1024xf32>
    tpu.vector_store %arg3[%c0_2, %c0_3], %31 {strides = array<i32>} : memref<2x1024xf32, #tpu.memory_space<vmem>>, vector<2x1024xf32>,
    return
  }
  func.func @transform_0(%arg0: i32) -> i32 {
    %c0_i32 = arith.constant 0 : i32
    %c0_i32_0 = arith.constant 0 : i32
    return %c0_i32 : i32
  }
  func.func @transform_1(%arg0: i32) -> (i32, i32) {
    %c0_i32 = arith.constant 0 : i32
    %c0_i32_0 = arith.constant 0 : i32
    return %arg0, %c0_i32 : i32, i32
  }
  func.func @transform_2(%arg0: i32) -> (i32, i32) {
    %c0_i32 = arith.constant 0 : i32
    %c0_i32_0 = arith.constant 0 : i32
    return %arg0, %c0_i32 : i32, i32
  }
}

</mosaic_0001>

<llo_original>
// kernel: tpu_custom_call.1
$region0: #{tpu_custom_call.1}
  #allocation0 [shape = 'u32[]', space=smem, size = 0x4, offset = 0x4, fixed_abs, tag = 'smem constant byte address 0x4 - core index']
  #allocation1 [shape = 'u32[72,128]{1,0:T(1,128)}', space=vmem, size = 0x9000, scoped, tag = 'internal scratch']
  #allocation2 [shape = 's32[1]{0:T(128)S(6)}', space=smem, size = 0x200, scoped, tag = 'scoped memory for tpu_custom_call.1']
  %s0 = inlined_call_operand.<no memory space> [shape: s32[1], index: 0, kind: input, shape index: {}]
  %s1 = inlined_call_operand.hbm [shape: f32[2,1024], index: 1, kind: input, shape index: {}]
  %s2 = inlined_call_operand.hbm [shape: f32[2,1024], index: 2, kind: output, shape index: {}]
  %s3 = sld [smem:[#allocation0]]
  $region22: #{tpu_custom_call.1} parent=0
    _
  %s5 = ssub.s32 1, %s3
  %s6 = scalar_select 0, %s5, %s3
  %7 = sst [smem:[#allocation2]] %s0
  $region1: #{tpu_custom_call.1} parent=0
    #allocation3 [shape = 'u8[8192]{0}', space=vmem, size = 0x2000, scoped, tag = 'input window, operand 1, single buffered']
    #allocation4 [shape = 's32[1]{0}', space=sflag, size = 0x4, scoped, tag = 'scoped memory for tpu_custom_call.1']
    #allocation5 [shape = 's32[1]{0}', space=sflag, size = 0x4, scoped, tag = 'scoped memory for tpu_custom_call.1']
    #allocation6 [shape = 'u8[8192]{0}', space=vmem, size = 0x2000, scoped, tag = 'output window, operand 0, single buffered']
    %8 = vsyncpa [#allocation4], 0
    %9 = vsyncpa [#allocation5], 0
    // Predicated region
    $region2: #{tpu_custom_call.1} parent=1 // pred_check
      _
    $region3: #{tpu_custom_call.1} parent=1 // pred_check_branch
      %11 = sbr.rel (0) target = $region5
    $region4: #{tpu_custom_call.1} parent=1 // pred_region
      _
    $region5: #{tpu_custom_call.1} parent=1 // pred_fallthru
      _
    // Predicated region
    $region6: #{tpu_custom_call.1} parent=1 // pred_check
      _
    $region7: #{tpu_custom_call.1} parent=1 // pred_check_branch
      %13 = sbr.rel (0) target = $region9
    $region8: #{tpu_custom_call.1} parent=1 // pred_region
      %15 = vsyncadd [#allocation4], 0
      %s17 = sshll.u32 %s1, 4
      %s18 = int_to_ptr.hbm [resolvable:$true] %s17
      %s19 = sshll.u32 [#allocation3], 4
      %s20 = int_to_ptr.vmem [resolvable:$true] %s19
      %22 = dma.hbm_to_vmem [thread:$0]  %s18, 256, %s20, [#allocation4]
    $region9: #{tpu_custom_call.1} parent=1 // pred_fallthru
      _
    // Predicated region
    $region10: #{tpu_custom_call.1} parent=1 // pred_check
      _
    $region11: #{tpu_custom_call.1} parent=1 // pred_check_branch
      %24 = sbr.rel (0) target = $region13
    $region12: #{tpu_custom_call.1} parent=1 // pred_region
      %26 = dma.done [#allocation4], 256
    $region13: #{tpu_custom_call.1} parent=1 // pred_fallthru
      _
    %v27 = vlaneseq
    %v28 = vshrl.u32 %v27, 7
    %v29 = vlaneseq
    %v30 = vand.u32 %v29, 127
    %v31 = vadd.s32 %v30, 128
    %v32 = vadd.s32 %v30, 256
    %v33 = vadd.s32 %v30, 384
    %v34 = vadd.s32 %v30, 512
    %v35 = vadd.s32 %v30, 640
    %v36 = vadd.s32 %v30, 768
    %v37 = vadd.s32 %v30, 896
    %s38 = smul.u32 0, 2
    %v39 = vstv %s38
    %v40 = vadd.s32 %v39, %v28
    %v41 = vmul.u32 %v40, 1024
    %v42 = vadd.s32 %v41, %v30
    %v43 = vadd.s32 %v41, %v31
    %v44 = vadd.s32 %v41, %v32
    %v45 = vadd.s32 %v41, %v33
    %v46 = vadd.s32 %v41, %v34
    %v47 = vadd.s32 %v41, %v35
    %v48 = vadd.s32 %v41, %v36
    %v49 = vadd.s32 %v41, %v37
    %s50 = sld [smem:[#allocation2]]
    %s51 = smul.u32 %s50, 2654435761
    %v52 = vstv %s51
    %v53 = vxor.u32 %v42, %v52
    %v54 = vxor.u32 %v43, %v52
    %v55 = vxor.u32 %v44, %v52
    %v56 = vxor.u32 %v45, %v52
    %v57 = vxor.u32 %v46, %v52
    %v58 = vxor.u32 %v47, %v52
    %v59 = vxor.u32 %v48, %v52
    %v60 = vxor.u32 %v49, %v52
    %v61 = vmul.u32 %v53, 3432918353
    %v62 = vmul.u32 %v54, 3432918353
    %v63 = vmul.u32 %v55, 3432918353
    %v64 = vmul.u32 %v56, 3432918353
    %v65 = vmul.u32 %v57, 3432918353
    %v66 = vmul.u32 %v58, 3432918353
    %v67 = vmul.u32 %v59, 3432918353
    %v68 = vmul.u32 %v60, 3432918353
    %v69 = vshrl.u32 %v61, 15
    %v70 = vshrl.u32 %v62, 15
    %v71 = vshrl.u32 %v63, 15
    %v72 = vshrl.u32 %v64, 15
    %v73 = vshrl.u32 %v65, 15
    %v74 = vshrl.u32 %v66, 15
    %v75 = vshrl.u32 %v67, 15
    %v76 = vshrl.u32 %v68, 15
    %v77 = vxor.u32 %v61, %v69
    %v78 = vxor.u32 %v62, %v70
    %v79 = vxor.u32 %v63, %v71
    %v80 = vxor.u32 %v64, %v72
    %v81 = vxor.u32 %v65, %v73
    %v82 = vxor.u32 %v66, %v74
    %v83 = vxor.u32 %v67, %v75
    %v84 = vxor.u32 %v68, %v76
    %v85 = vmul.u32 %v77, 2246822507
    %v86 = vmul.u32 %v78, 2246822507
    %v87 = vmul.u32 %v79, 2246822507
    %v88 = vmul.u32 %v80, 2246822507
    %v89 = vmul.u32 %v81, 2246822507
    %v90 = vmul.u32 %v82, 2246822507
    %v91 = vmul.u32 %v83, 2246822507
    %v92 = vmul.u32 %v84, 2246822507
    %v93 = vshrl.u32 %v85, 13
    %v94 = vshrl.u32 %v86, 13
    %v95 = vshrl.u32 %v87, 13
    %v96 = vshrl.u32 %v88, 13
    %v97 = vshrl.u32 %v89, 13
    %v98 = vshrl.u32 %v90, 13
    %v99 = vshrl.u32 %v91, 13
    %v100 = vshrl.u32 %v92, 13
    %v101 = vxor.u32 %v85, %v93
    %v102 = vxor.u32 %v86, %v94
    %v103 = vxor.u32 %v87, %v95
    %v104 = vxor.u32 %v88, %v96
    %v105 = vxor.u32 %v89, %v97
    %v106 = vxor.u32 %v90, %v98
    %v107 = vxor.u32 %v91, %v99
    %v108 = vxor.u32 %v92, %v100
    %v109 = vmul.u32 %v101, 3266489909
    %v110 = vmul.u32 %v102, 3266489909
    %v111 = vmul.u32 %v103, 3266489909
    %v112 = vmul.u32 %v104, 3266489909
    %v113 = vmul.u32 %v105, 3266489909
    %v114 = vmul.u32 %v106, 3266489909
    %v115 = vmul.u32 %v107, 3266489909
    %v116 = vmul.u32 %v108, 3266489909
    %v117 = vshrl.u32 %v109, 16
    %v118 = vshrl.u32 %v110, 16
    %v119 = vshrl.u32 %v111, 16
    %v120 = vshrl.u32 %v112, 16
    %v121 = vshrl.u32 %v113, 16
    %v122 = vshrl.u32 %v114, 16
    %v123 = vshrl.u32 %v115, 16
    %v124 = vshrl.u32 %v116, 16
    %v125 = vxor.u32 %v109, %v117
    %v126 = vxor.u32 %v110, %v118
    %v127 = vxor.u32 %v111, %v119
    %v128 = vxor.u32 %v112, %v120
    %v129 = vxor.u32 %v113, %v121
    %v130 = vxor.u32 %v114, %v122
    %v131 = vxor.u32 %v115, %v123
    %v132 = vxor.u32 %v116, %v124
    %v133 = vld [vmem:[#allocation3] sm:$0xff]
    %v134 = vld [vmem:[#allocation3 + $0x8] sm:$0xff]
    %v135 = vadd.s32 %v125, 2147483648
    %vm137 = vcmp.lt.s32.totalorder %v135, 1717986918
    %v138 = vadd.s32 %v126, 2147483648
    %vm140 = vcmp.lt.s32.totalorder %v138, 1717986918
    %v141 = vadd.s32 %v127, 2147483648
    %vm143 = vcmp.lt.s32.totalorder %v141, 1717986918
    %v144 = vadd.s32 %v128, 2147483648
    %vm146 = vcmp.lt.s32.totalorder %v144, 1717986918
    %v147 = vadd.s32 %v129, 2147483648
    %vm149 = vcmp.lt.s32.totalorder %v147, 1717986918
    %v150 = vadd.s32 %v130, 2147483648
    %vm152 = vcmp.lt.s32.totalorder %v150, 1717986918
    %v153 = vadd.s32 %v131, 2147483648
    %vm155 = vcmp.lt.s32.totalorder %v153, 1717986918
    %v156 = vadd.s32 %v132, 2147483648
    %vm158 = vcmp.lt.s32.totalorder %v156, 1717986918
    %161 = vst [vmem:[#allocation1] ss:$4 sm:$0xff] %v133
    %s162 = scalar_lea.vmem [#allocation1], 32
    %163 = vst [vmem:[%s162] ss:$4 sm:$0xff] %v134
    %v164 = vld.sshfl [vmem:[#allocation1] sm:$0xff pattern:$0x73625140]
    %v165 = vld.sshfl [vmem:[#allocation1 + $0x8] sm:$0xff pattern:$0x73625140]
    %v166 = vld.sshfl [vmem:[#allocation1 + $0x10] sm:$0xff pattern:$0x73625140]
    %v167 = vld.sshfl [vmem:[#allocation1 + $0x18] sm:$0xff pattern:$0x73625140]
    %v168 = vld.sshfl [vmem:[#allocation1 + $0x20] sm:$0xff pattern:$0x73625140]
    %v169 = vld.sshfl [vmem:[#allocation1 + $0x28] sm:$0xff pattern:$0x73625140]
    %v170 = vld.sshfl [vmem:[#allocation1 + $0x30] sm:$0xff pattern:$0x73625140]
    %v171 = vld.sshfl [vmem:[#allocation1 + $0x38] sm:$0xff pattern:$0x73625140]
    %v180 = vsel %vm137, 0.0, %v164
    %v181 = vsel %vm140, 0.0, %v165
    %v182 = vsel %vm143, 0.0, %v166
    %v183 = vsel %vm146, 0.0, %v167
    %v184 = vsel %vm149, 0.0, %v168
    %v185 = vsel %vm152, 0.0, %v169
    %v186 = vsel %vm155, 0.0, %v170
    %v187 = vsel %vm158, 0.0, %v171
    %v196 = vrot.slane %v181, 6
    %v197 = vrot.slane %v182, 4
    %v198 = vrot.slane %v183, 2
    %v199 = vrot.slane %v185, 6
    %v200 = vrot.slane %v186, 4
    %v201 = vrot.slane %v187, 2
    %vm202 = vcmask 1041408
    %v203 = vsel %vm202, %v180, %v196
    %vm204 = vcmask 1045508
    %v205 = vsel %vm204, %v197, %v198
    %vm206 = vcmask 1043456
    %v207 = vsel %vm206, %v203, %v205
    %v208 = vsel %vm202, %v184, %v199
    %v209 = vsel %vm204, %v200, %v201
    %v210 = vsel %vm206, %v208, %v209
    %213 = vst [vmem:[#allocation6] sm:$0xff] %v207
    %214 = vst [vmem:[#allocation6 + $0x8] sm:$0xff] %v210
    // Predicated region
    $region14: #{tpu_custom_call.1} parent=1 // pred_check
      _
    $region15: #{tpu_custom_call.1} parent=1 // pred_check_branch
      %216 = sbr.rel (0) target = $region17
    $region16: #{tpu_custom_call.1} parent=1 // pred_region
      %218 = vsyncadd [#allocation5], 0
      %s220 = sshll.u32 [#allocation6], 4
      %s221 = int_to_ptr.vmem [resolvable:$true] %s220
      %s222 = sshll.u32 %s2, 4
      %s223 = int_to_ptr.hbm [resolvable:$true] %s222
      %225 = dma.vmem_to_hbm [thread:$0]  %s221, 256, %s223, [#allocation5]
    $region17: #{tpu_custom_call.1} parent=1 // pred_fallthru
      _
    // Predicated region
    $region18: #{tpu_custom_call.1} parent=1 // pred_check
      _
    $region19: #{tpu_custom_call.1} parent=1 // pred_check_branch
      %227 = sbr.rel (0) target = $region21
    $region20: #{tpu_custom_call.1} parent=1 // pred_region
      %229 = dma.done [#allocation5], 256
    $region21: #{tpu_custom_call.1} parent=1 // pred_fallthru
      _
    %230 = vsyncpa [#allocation4], 1
    %231 = vsyncpa [#allocation5], 1

</llo_original>
